<compile_context>
chip_gen: v7x
topology: tpu7x:2x2x1
jax: 0.10.0
libtpu: 0.0.40
codegen_flags: <defaults>
</compile_context>

<pallas_src>
import functools

import jax
import jax.numpy as jnp
import numpy as np
from jax.experimental import pallas as pl
from jax.experimental.pallas import tpu as pltpu

# dot_general dimension numbers for "A @ B.T" (contract the last axis of both).
_CONTRACT_LAST = (((1,), (1,)), ((), ()))


def _cluster_and_contrastive_kernel(
    xq_ref,    # (TQ, Dp) f32   embs, row block (qi)
    xk_ref,    # (TK, Dp) f32   embs, col block (index clamped to max(kj, qi))
    clu_ref,   # (K,  Dp) f32   cluster centroids (full, resident)
    ctq_ref,   # (TQ, 1)  i32   cluster_target, row block
    tq_ref,    # (TQ, 1)  i32   coles_target, row block (sublane-oriented)
    tk_ref,    # (1,1,TK) i32   coles_target, col block (lane-oriented)
    sqq_ref,   # (TQ, 1)  f32   ||x_i||^2, row block
    sqk_ref,   # (1,1,TK) f32   ||x_j||^2, col block (lane-oriented)
    out_ref,   # (8, 128) f32   per-row-block partials: [0,0]=sum CE, [0,1]=sum contrastive
    con_acc,   # (1, 1)   f32   VMEM scratch: running contrastive sum for this row block
    *,
    n_valid: int,
    margin: float,
):
    qi = pl.program_id(0)
    kj = pl.program_id(1)
    nb_k = pl.num_programs(1)

    tq_blk = xq_ref.shape[0]
    tk_blk = xk_ref.shape[0]

    @pl.when(kj == 0)
    def _init():
        con_acc[...] = jnp.zeros_like(con_acc)

    # ---------------- contrastive tile: only live (upper-triangular) blocks ----------------
    @pl.when(kj >= qi)
    def _contrastive():
        xq = xq_ref[...]                      # (TQ, Dp)
        xk = xk_ref[...]                      # (TK, Dp)
        gram = jax.lax.dot_general(xq, xk, _CONTRACT_LAST,
                                   preferred_element_type=jnp.float32)      # (TQ, TK)
        # ||x_i||^2 + ||x_j||^2 - 2 x_i.x_j, both sumsq precomputed in the wrapper.
        d2 = jnp.maximum(sqq_ref[...] + sqk_ref[0] - 2.0 * gram, 0.0)
        dist = jnp.sqrt(d2 + 1e-12)
        same = tq_ref[...] == tk_ref[0]                                       # int32 compare
        hinge = jnp.maximum(margin - dist, 0.0)
        terms = jnp.where(same, d2, hinge * hinge)      # fused pos/neg select

        # Strictly-upper interior tile with no padded columns: the pair mask is all-true.
        full_tile = jnp.logical_and(kj > qi, (kj + 1) * tk_blk <= n_valid)

        @pl.when(full_tile)
        def _unmasked():
            con_acc[...] += jnp.sum(jnp.sum(terms, axis=1, keepdims=True),
                                    axis=0, keepdims=True)

        @pl.when(jnp.logical_not(full_tile))
        def _masked():
            row_g = qi * tq_blk + jax.lax.broadcasted_iota(jnp.int32, (tq_blk, tk_blk), 0)
            col_g = kj * tk_blk + jax.lax.broadcasted_iota(jnp.int32, (tq_blk, tk_blk), 1)
            # row_g < col_g < n_valid already implies row_g < n_valid.
            pair_ok = jnp.logical_and(row_g < col_g, col_g < n_valid)
            con_acc[...] += jnp.sum(jnp.sum(jnp.where(pair_ok, terms, 0.0),
                                            axis=1, keepdims=True),
                                    axis=0, keepdims=True)

    # ---------------- finalize row block: cluster softmax-CE + single (8,128) store ----------------
    @pl.when(kj == nb_k - 1)
    def _finalize():
        xq = xq_ref[...]
        logits = jax.lax.dot_general(xq, clu_ref[...], _CONTRACT_LAST,
                                     preferred_element_type=jnp.float32)     # (TQ, K)
        kdim = logits.shape[1]
        m = jnp.max(logits, axis=-1, keepdims=True)
        lse = m + jnp.log(jnp.sum(jnp.exp(logits - m), axis=-1, keepdims=True))  # (TQ, 1)
        # target logit via iota == target (no one-hot input / DMA)
        kiota = jax.lax.broadcasted_iota(jnp.int32, (tq_blk, kdim), 1)
        tgt = jnp.sum(jnp.where(kiota == ctq_ref[...], logits, 0.0),
                      axis=-1, keepdims=True)
        row_valid = (qi * tq_blk
                     + jax.lax.broadcasted_iota(jnp.int32, (tq_blk, 1), 0)) < n_valid
        cl11 = jnp.sum(jnp.where(row_valid, lse - tgt, 0.0), axis=0, keepdims=True)  # (1,1)

        # Lane-dense (8,128) partial tile, one unmasked full-tile store per row block.
        sub = jax.lax.broadcasted_iota(jnp.int32, (8, 128), 0)
        lane = jax.lax.broadcasted_iota(jnp.int32, (8, 128), 1)
        is0 = sub == 0
        out_ref[...] = (jnp.where(jnp.logical_and(is0, lane == 0), cl11, 0.0)
                        + jnp.where(jnp.logical_and(is0, lane == 1), con_acc[...], 0.0))


def _round_up(x, m):
    return ((x + m - 1) // m) * m


def _tpu_vmem_bytes():
    try:
        return int(pltpu.get_tpu_info().vmem_capacity_bytes)
    except Exception:
        return 64 << 20   # conservative fallback (v7x per-TC VMEM)


def _pick_tile(n: int, d_pad: int) -> int:
    """Edge of the pairwise tile.

    Small problems: one padded tile.  Large problems: 256 (matches v6e/v7x's
    2x256^2 MXU); drop to 128 when the double-buffered xq+xk footprint would
    eat more than half the physical VMEM (v7x has only 64 MiB; 128 also better
    matches v5e's 4x128^2 MXU).
    """
    if n <= 256:
        return max(8, _round_up(n, 8))
    vmem = _tpu_vmem_bytes()
    tile = 256
    if 2 * 2 * tile * d_pad * 4 > vmem // 2:
        tile = 128
    return tile


def _compiler_params(tile: int, d_pad: int, k: int):
    # double-buffered xq + xk dominate; clusters resident; everything else is tiny.
    est = 2 * 2 * tile * d_pad * 4 + 2 * k * d_pad * 4 + (4 << 20)
    kwargs = dict(dimension_semantics=("parallel", "arbitrary"))
    if est > (16 << 20):  # beyond v5e's default scoped budget -> ask explicitly
        phys = _tpu_vmem_bytes()
        kwargs["vmem_limit_bytes"] = int(min(est * 1.25, phys * 0.875))
    return pltpu.CompilerParams(**kwargs)


def cluster_and_contrastive(
    embs,            # (N, D) float32
    cluster_target,  # (N,)   int
    coles_target,    # (N,)   int
    clusters,        # (K, D) float32
    *,
    cluster_weight: float = 1.0,
    contrastive_weight: float = 1.0,
    margin: float = 0.5,
    tile=None,
):
    n, d = embs.shape
    k = clusters.shape[0]

    # Lane-pad the feature dim (zero pad changes neither gram, sumsq, nor logits).
    d_pad = _round_up(d, 128) if d % 128 else d
    if d_pad != d:
        embs = jnp.pad(embs, ((0, 0), (0, d_pad - d)))
        clusters = jnp.pad(clusters, ((0, 0), (0, d_pad - d)))

    if tile is None:
        tile = _pick_tile(n, d_pad)
    tile = max(8, _round_up(int(tile), 8))
    n_pad = _round_up(n, tile)
    n_blocks = n_pad // tile
    pad = n_pad - n

    ct = cluster_target.astype(jnp.int32)
    cot = coles_target.astype(jnp.int32)
    embs_p = embs
    if pad:
        embs_p = jnp.pad(embs, ((0, pad), (0, 0)))
        ct = jnp.pad(ct, (0, pad))                        # padded rows are masked in-kernel
        cot = jnp.pad(cot, (0, pad), constant_values=-1)
    ct_col = ct.reshape(n_pad, 1)
    cot_col = cot.reshape(n_pad, 1)
    cot_row = cot.reshape(n_blocks, 1, tile)              # lane-oriented per col block

    # Loop-invariant sum of squares, computed once in the wrapper and fed both ways.
    sumsq = jnp.sum(embs_p * embs_p, axis=-1)             # (n_pad,)
    sq_col = sumsq.reshape(n_pad, 1)
    sq_row = sumsq.reshape(n_blocks, 1, tile)

    kernel = functools.partial(
        _cluster_and_contrastive_kernel,
        n_valid=int(n),
        margin=float(margin),
    )

    def row_map(qi, kj):
        return (qi, 0)

    # Clamp dead (below-diagonal) steps to the diagonal block: block index is
    # unchanged across those steps, so Pallas issues no DMA for them.
    def col_map(qi, kj):
        return (jnp.maximum(kj, qi), 0)

    def col3_map(qi, kj):
        return (jnp.maximum(kj, qi), 0, 0)

    partials = pl.pallas_call(
        kernel,
        out_shape=jax.ShapeDtypeStruct((n_blocks * 8, 128), jnp.float32),
        grid_spec=pltpu.PrefetchScalarGridSpec(
            num_scalar_prefetch=0,
            grid=(n_blocks, n_blocks),          # (row-block, col-block); reduction axis last
            in_specs=[
                pl.BlockSpec((tile, d_pad), row_map),               # embs rows
                pl.BlockSpec((tile, d_pad), col_map),               # embs cols (clamped)
                pl.BlockSpec((k, d_pad), lambda qi, kj: (0, 0)),    # centroids (resident)
                pl.BlockSpec((tile, 1), row_map),                   # cluster_target rows
                pl.BlockSpec((tile, 1), row_map),                   # coles_target rows
                pl.BlockSpec((1, 1, tile), col3_map),               # coles_target cols (lane)
                pl.BlockSpec((tile, 1), row_map),                   # ||x||^2 rows
                pl.BlockSpec((1, 1, tile), col3_map),               # ||x||^2 cols (lane)
            ],
            out_specs=pl.BlockSpec((8, 128), lambda qi, kj: (qi, 0)),
            scratch_shapes=[pltpu.VMEM((1, 1), jnp.float32)],
        ),
        compiler_params=_compiler_params(tile, d_pad, k),
    )(embs_p, embs_p, clusters, ct_col, cot_col, cot_row, sq_col, sq_row)

    # Tiny cross-row-block combine (glue outside the hot path).
    per_block = partials.reshape(n_blocks, 8, 128)
    cl_loss = jnp.sum(per_block[:, 0, 0]) / float(n)
    con_loss = jnp.sum(per_block[:, 0, 1])
    loss = cluster_weight * cl_loss + contrastive_weight * con_loss
    # TODO(synk): the torch module merges arbitrary info dicts from injected
    # sub-losses; here we expose the two scalar sub-losses.
    info = {"cluster_loss": cl_loss, "contrastive_loss": con_loss}
    return loss, info


def _reference(embs, cluster_target, coles_target, clusters,
               cluster_weight=1.0, contrastive_weight=1.0, margin=0.5):
    # pure-JAX reference for a sanity check
    logits = embs @ clusters.T
    lse = jax.nn.logsumexp(logits, axis=-1)
    cl = jnp.mean(lse - jnp.take_along_axis(logits, cluster_target[:, None], axis=1)[:, 0])

    diff = embs[:, None, :] - embs[None, :, :]
    d2 = jnp.sum(diff * diff, axis=-1)
    dd = jnp.sqrt(d2 + 1e-12)
    n = embs.shape[0]
    iu = jnp.triu(jnp.ones((n, n), bool), k=1)
    same = coles_target[:, None] == coles_target[None, :]
    pos = jnp.sum(jnp.where(iu & same, d2, 0.0))
    neg = jnp.sum(jnp.where(iu & ~same, jnp.maximum(margin - dd, 0.0) ** 2, 0.0))
    con = pos + neg
    return cluster_weight * cl + contrastive_weight * con, cl, con


if __name__ == "__main__":
    # --- case 1: canonical CoLES toy batch (4 classes x 2 views), single tile ---
    key = jax.random.PRNGKey(0)
    N, D, K = 8, 32, 4
    k_embs, k_clu = jax.random.split(key)
    embs = jax.random.normal(k_embs, (N, D), dtype=jnp.float32)
    clusters = jax.random.normal(k_clu, (K, D), dtype=jnp.float32)
    cluster_target = jnp.array([0, 0, 1, 1, 2, 2, 3, 3], dtype=jnp.int32)
    coles_target = jnp.array([0, 0, 1, 1, 2, 2, 3, 3], dtype=jnp.int32)

    loss, info = cluster_and_contrastive(
        embs, cluster_target, coles_target, clusters,
        cluster_weight=1.0, contrastive_weight=1.0, margin=0.5,
    )
    jax.block_until_ready(loss)

    ref_total, ref_cl, ref_con = _reference(embs, cluster_target, coles_target, clusters)
    np.testing.assert_allclose(np.asarray(loss), np.asarray(ref_total), rtol=1e-4, atol=1e-4)
    np.testing.assert_allclose(np.asarray(info["cluster_loss"]), np.asarray(ref_cl),
                               rtol=1e-4, atol=1e-4)
    np.testing.assert_allclose(np.asarray(info["contrastive_loss"]), np.asarray(ref_con),
                               rtol=1e-4, atol=1e-4)

    # --- case 2: exercises the triangular skip, clamped col DMA, padding/masking ---
    N2, D2, K2 = 20, 32, 5
    k1, k2, k3, k4 = jax.random.split(jax.random.PRNGKey(1), 4)
    embs2 = jax.random.normal(k1, (N2, D2), dtype=jnp.float32)
    clusters2 = jax.random.normal(k2, (K2, D2), dtype=jnp.float32)
    cluster_target2 = jax.random.randint(k3, (N2,), 0, K2, dtype=jnp.int32)
    coles_target2 = jax.random.randint(k4, (N2,), 0, 7, dtype=jnp.int32)

    loss2, info2 = cluster_and_contrastive(
        embs2, cluster_target2, coles_target2, clusters2,
        cluster_weight=0.7, contrastive_weight=1.3, margin=0.5, tile=8,  # -> 3x3 grid, pad=4
    )
    jax.block_until_ready(loss2)

    ref2_total, ref2_cl, ref2_con = _reference(
        embs2, cluster_target2, coles_target2, clusters2,
        cluster_weight=0.7, contrastive_weight=1.3, margin=0.5)
    np.testing.assert_allclose(np.asarray(loss2), np.asarray(ref2_total), rtol=1e-4, atol=1e-3)
    np.testing.assert_allclose(np.asarray(info2["cluster_loss"]), np.asarray(ref2_cl),
                               rtol=1e-4, atol=1e-3)
    np.testing.assert_allclose(np.asarray(info2["contrastive_loss"]), np.asarray(ref2_con),
                               rtol=1e-4, atol=1e-3)

    print("KERNEL_OK")
</pallas_src>

<mosaic_0001>
module attributes {stable_mosaic.version = 11 : i64} {
  func.func @_cluster_and_contrastive_kernel(%arg0: i32, %arg1: i32, %arg2: memref<8x128xf32, #tpu.memory_space<vmem>>, %arg3: memref<8x128xf32, #tpu.memory_space<vmem>>, %arg4: memref<4x128xf32, #tpu.memory_space<vmem>>, %arg5: memref<8x1xi32, #tpu.memory_space<vmem>>, %arg6: memref<8x1xi32, #tpu.memory_space<vmem>>, %arg7: memref<1x1x8xi32, #tpu.memory_space<vmem>>, %arg8: memref<8x1xf32, #tpu.memory_space<vmem>>, %arg9: memref<1x1x8xf32, #tpu.memory_space<vmem>>, %arg10: memref<8x128xf32, #tpu.memory_space<vmem>>, %arg11: memref<1x1xf32, #tpu.memory_space<vmem>>) attributes {dimension_semantics = [#tpu.dimension_semantics<parallel>, #tpu.dimension_semantics<arbitrary>], iteration_bounds = array<i64: 1, 1>, scalar_prefetch = 0 : i64, scratch_operands = 1 : i64, tpu.core_type = #tpu.core_type<tc>, window_params = [{transform_indices = @transform_0, window_bounds = array<i64: 8, 128>}, {transform_indices = @transform_1, window_bounds = array<i64: 8, 128>}, {pipeline_mode = #tpu.pipeline_mode<synchronous>, transform_indices = @transform_2, window_bounds = array<i64: 4, 128>}, {transform_indices = @transform_3, window_bounds = array<i64: 8, 1>}, {transform_indices = @transform_4, window_bounds = array<i64: 8, 1>}, {transform_indices = @transform_5, window_bounds = array<i64: 1, 1, 8>}, {transform_indices = @transform_6, window_bounds = array<i64: 8, 1>}, {transform_indices = @transform_7, window_bounds = array<i64: 1, 1, 8>}, {transform_indices = @transform_8, window_bounds = array<i64: 8, 128>}]} {
    %c0_i32 = arith.constant 0 : i32
    %0 = arith.cmpi eq, %arg1, %c0_i32 : i32
    %1 = arith.extui %0 : i1 to i32
    %c0_i32_0 = arith.constant 0 : i32
    %2 = arith.cmpi ne, %1, %c0_i32_0 : i32
    scf.if %2 {
      %cst = arith.constant 0.000000e+00 : f32
      %9 = vector.broadcast %cst : f32 to vector<1x1xf32>
      %c0 = arith.constant 0 : index
      %c0_4 = arith.constant 0 : index
      %10 = vector.load %arg11[%c0, %c0_4] : memref<1x1xf32, #tpu.memory_space<vmem>>, vector<1x1xf32>
      tpu.vector_store %arg11[%c0, %c0_4], %9 {strides = array<i32>} : memref<1x1xf32, #tpu.memory_space<vmem>>, vector<1x1xf32>,
    } else {
    }
    %3 = arith.cmpi sge, %arg1, %arg0 : i32
    %4 = arith.extui %3 : i1 to i32
    %c0_i32_1 = arith.constant 0 : i32
    %5 = arith.cmpi ne, %4, %c0_i32_1 : i32
    scf.if %5 {
      %c0 = arith.constant 0 : index
      %c0_4 = arith.constant 0 : index
      %9 = vector.load %arg2[%c0, %c0_4] : memref<8x128xf32, #tpu.memory_space<vmem>>, vector<8x128xf32>
      %c0_5 = arith.constant 0 : index
      %c0_6 = arith.constant 0 : index
      %10 = vector.load %arg3[%c0_5, %c0_6] : memref<8x128xf32, #tpu.memory_space<vmem>>, vector<8x128xf32>
      %cst = arith.constant dense<0.000000e+00> : vector<8x8xf32>
      %11 = tpu.matmul %9, %10, %cst {dimension_numbers = #tpu.dot_dimension_numbers<[1], [1], [0], [0], [0, 0, 1, 0], [], []>} : vector<8x128xf32>, vector<8x128xf32>, vector<8x8xf32> -> vector<8x8xf32>
      %c0_7 = arith.constant 0 : index
      %c0_8 = arith.constant 0 : index
      %12 = vector.load %arg8[%c0_7, %c0_8] : memref<8x1xf32, #tpu.memory_space<vmem>>, vector<8x1xf32>
      %c0_9 = arith.constant 0 : index
      %c0_10 = arith.constant 0 : index
      %c0_11 = arith.constant 0 : index
      %13 = vector.load %arg9[%c0_9, %c0_10, %c0_11] : memref<1x1x8xf32, #tpu.memory_space<vmem>>, vector<1x1x8xf32>
      %14 = vector.shape_cast %13 : vector<1x1x8xf32> to vector<1x8xf32>
      %15 = vector.broadcast %12 : vector<8x1xf32> to vector<8x8xf32>
      %16 = vector.broadcast %14 : vector<1x8xf32> to vector<8x8xf32>
      %17 = arith.addf %15, %16 : vector<8x8xf32>
      %cst_12 = arith.constant 2.000000e+00 : f32
      %18 = vector.broadcast %cst_12 : f32 to vector<8x8xf32>
      %19 = arith.mulf %18, %11 : vector<8x8xf32>
      %20 = arith.subf %17, %19 : vector<8x8xf32>
      %cst_13 = arith.constant 0.000000e+00 : f32
      %21 = vector.broadcast %cst_13 : f32 to vector<8x8xf32>
      %22 = arith.maximumf %20, %21 : vector<8x8xf32>
      %cst_14 = arith.constant 9.99999996E-13 : f32
      %23 = vector.broadcast %cst_14 : f32 to vector<8x8xf32>
      %24 = arith.addf %22, %23 : vector<8x8xf32>
      %25 = math.sqrt %24 : vector<8x8xf32>
      %c0_15 = arith.constant 0 : index
      %c0_16 = arith.constant 0 : index
      %26 = vector.load %arg6[%c0_15, %c0_16] : memref<8x1xi32, #tpu.memory_space<vmem>>, vector<8x1xi32>
      %c0_17 = arith.constant 0 : index
      %c0_18 = arith.constant 0 : index
      %c0_19 = arith.constant 0 : index
      %27 = vector.load %arg7[%c0_17, %c0_18, %c0_19] : memref<1x1x8xi32, #tpu.memory_space<vmem>>, vector<1x1x8xi32>
      %28 = vector.shape_cast %27 : vector<1x1x8xi32> to vector<1x8xi32>
      %29 = vector.broadcast %26 : vector<8x1xi32> to vector<8x8xi32>
      %30 = vector.broadcast %28 : vector<1x8xi32> to vector<8x8xi32>
      %31 = arith.cmpi eq, %29, %30 : vector<8x8xi32>
      %cst_20 = arith.constant 5.000000e-01 : f32
      %32 = vector.broadcast %cst_20 : f32 to vector<8x8xf32>
      %33 = arith.subf %32, %25 : vector<8x8xf32>
      %cst_21 = arith.constant 0.000000e+00 : f32
      %34 = vector.broadcast %cst_21 : f32 to vector<8x8xf32>
      %35 = arith.maximumf %33, %34 : vector<8x8xf32>
      %36 = arith.mulf %35, %35 : vector<8x8xf32>
      %37 = arith.select %31, %22, %36 : vector<8x8xi1>, vector<8x8xf32>
      %38 = arith.cmpi sgt, %arg1, %arg0 : i32
      %c1_i32 = arith.constant 1 : i32
      %39 = arith.addi %arg1, %c1_i32 : i32
      %c8_i32 = arith.constant 8 : i32
      %40 = arith.muli %39, %c8_i32 : i32
      %c8_i32_22 = arith.constant 8 : i32
      %41 = arith.cmpi sle, %40, %c8_i32_22 : i32
      %42 = arith.andi %38, %41 : i1
      %43 = arith.extui %42 : i1 to i32
      %c0_i32_23 = arith.constant 0 : i32
      %44 = arith.cmpi ne, %43, %c0_i32_23 : i32
      scf.if %44 {
        %c0_25 = arith.constant 0 : index
        %c0_26 = arith.constant 0 : index
        %48 = vector.load %arg11[%c0_25, %c0_26] : memref<1x1xf32, #tpu.memory_space<vmem>>, vector<1x1xf32>
        %cst_27 = arith.constant dense<0.000000e+00> : vector<8xf32>
        %49 = vector.multi_reduction <add>, %37, %cst_27 [1] : vector<8x8xf32> to vector<8xf32>
        %50 = vector.shape_cast %49 : vector<8xf32> to vector<8x1xf32>
        %cst_28 = arith.constant dense<0.000000e+00> : vector<1xf32>
        %51 = vector.multi_reduction <add>, %50, %cst_28 [0] : vector<8x1xf32> to vector<1xf32>
        %52 = vector.shape_cast %51 : vector<1xf32> to vector<1x1xf32>
        %53 = arith.addf %48, %52 : vector<1x1xf32>
        %c0_29 = arith.constant 0 : index
        %c0_30 = arith.constant 0 : index
        %54 = vector.load %arg11[%c0_29, %c0_30] : memref<1x1xf32, #tpu.memory_space<vmem>>, vector<1x1xf32>
        tpu.vector_store %arg11[%c0_29, %c0_30], %53 {strides = array<i32>} : memref<1x1xf32, #tpu.memory_space<vmem>>, vector<1x1xf32>,
      } else {
      }
      %true = arith.constant true
      %45 = arith.xori %42, %true : i1
      %46 = arith.extui %45 : i1 to i32
      %c0_i32_24 = arith.constant 0 : i32
      %47 = arith.cmpi ne, %46, %c0_i32_24 : i32
      scf.if %47 {
        %c8_i32_25 = arith.constant 8 : i32
        %48 = arith.muli %arg0, %c8_i32_25 : i32
        %49 = tpu.iota {dimensions = array<i32: 0>} : vector<8x8xi32>
        %50 = vector.broadcast %48 : i32 to vector<8x8xi32>
        %51 = arith.addi %50, %49 : vector<8x8xi32>
        %c8_i32_26 = arith.constant 8 : i32
        %52 = arith.muli %arg1, %c8_i32_26 : i32
        %53 = tpu.iota {dimensions = array<i32: 1>} : vector<8x8xi32>
        %54 = vector.broadcast %52 : i32 to vector<8x8xi32>
        %55 = arith.addi %54, %53 : vector<8x8xi32>
        %56 = arith.cmpi slt, %51, %55 : vector<8x8xi32>
        %c8_i32_27 = arith.constant 8 : i32
        %57 = vector.broadcast %c8_i32_27 : i32 to vector<8x8xi32>
        %58 = arith.cmpi slt, %55, %57 : vector<8x8xi32>
        %59 = arith.andi %56, %58 : vector<8x8xi1>
        %c0_28 = arith.constant 0 : index
        %c0_29 = arith.constant 0 : index
        %60 = vector.load %arg11[%c0_28, %c0_29] : memref<1x1xf32, #tpu.memory_space<vmem>>, vector<1x1xf32>
        %cst_30 = arith.constant 0.000000e+00 : f32
        %61 = vector.broadcast %cst_30 : f32 to vector<8x8xf32>
        %62 = arith.select %59, %37, %61 : vector<8x8xi1>, vector<8x8xf32>
        %cst_31 = arith.constant dense<0.000000e+00> : vector<8xf32>
        %63 = vector.multi_reduction <add>, %62, %cst_31 [1] : vector<8x8xf32> to vector<8xf32>
        %64 = vector.shape_cast %63 : vector<8xf32> to vector<8x1xf32>
        %cst_32 = arith.constant dense<0.000000e+00> : vector<1xf32>
        %65 = vector.multi_reduction <add>, %64, %cst_32 [0] : vector<8x1xf32> to vector<1xf32>
        %66 = vector.shape_cast %65 : vector<1xf32> to vector<1x1xf32>
        %67 = arith.addf %60, %66 : vector<1x1xf32>
        %c0_33 = arith.constant 0 : index
        %c0_34 = arith.constant 0 : index
        %68 = vector.load %arg11[%c0_33, %c0_34] : memref<1x1xf32, #tpu.memory_space<vmem>>, vector<1x1xf32>
        tpu.vector_store %arg11[%c0_33, %c0_34], %67 {strides = array<i32>} : memref<1x1xf32, #tpu.memory_space<vmem>>, vector<1x1xf32>,
      } else {
      }
    } else {
    }
    %c0_i32_2 = arith.constant 0 : i32
    %6 = arith.cmpi eq, %arg1, %c0_i32_2 : i32
    %7 = arith.extui %6 : i1 to i32
    %c0_i32_3 = arith.constant 0 : i32
    %8 = arith.cmpi ne, %7, %c0_i32_3 : i32
    scf.if %8 {
      %c0 = arith.constant 0 : index
      %c0_4 = arith.constant 0 : index
      %9 = vector.load %arg2[%c0, %c0_4] : memref<8x128xf32, #tpu.memory_space<vmem>>, vector<8x128xf32>
      %c0_5 = arith.constant 0 : index
      %c0_6 = arith.constant 0 : index
      %10 = vector.load %arg4[%c0_5, %c0_6] : memref<4x128xf32, #tpu.memory_space<vmem>>, vector<4x128xf32>
      %cst = arith.constant dense<0.000000e+00> : vector<8x4xf32>
      %11 = tpu.matmul %9, %10, %cst {dimension_numbers = #tpu.dot_dimension_numbers<[1], [1], [0], [0], [0, 0, 1, 0], [], []>} : vector<8x128xf32>, vector<4x128xf32>, vector<8x4xf32> -> vector<8x4xf32>
      %cst_7 = arith.constant dense<0xFF800000> : vector<8xf32>
      %12 = vector.multi_reduction <maximumf>, %11, %cst_7 [1] : vector<8x4xf32> to vector<8xf32>
      %13 = vector.shape_cast %12 : vector<8xf32> to vector<8x1xf32>
      %14 = vector.broadcast %13 : vector<8x1xf32> to vector<8x4xf32>
      %15 = arith.subf %11, %14 : vector<8x4xf32>
      %16 = math.exp %15 : vector<8x4xf32>
      %cst_8 = arith.constant dense<0.000000e+00> : vector<8xf32>
      %17 = vector.multi_reduction <add>, %16, %cst_8 [1] : vector<8x4xf32> to vector<8xf32>
      %18 = vector.shape_cast %17 : vector<8xf32> to vector<8x1xf32>
      %19 = math.log %18 : vector<8x1xf32>
      %20 = arith.addf %13, %19 : vector<8x1xf32>
      %21 = tpu.iota {dimensions = array<i32: 1>} : vector<8x4xi32>
      %c0_9 = arith.constant 0 : index
      %c0_10 = arith.constant 0 : index
      %22 = vector.load %arg5[%c0_9, %c0_10] : memref<8x1xi32, #tpu.memory_space<vmem>>, vector<8x1xi32>
      %23 = vector.broadcast %22 : vector<8x1xi32> to vector<8x4xi32>
      %24 = arith.cmpi eq, %21, %23 : vector<8x4xi32>
      %cst_11 = arith.constant 0.000000e+00 : f32
      %25 = vector.broadcast %cst_11 : f32 to vector<8x4xf32>
      %26 = arith.select %24, %11, %25 : vector<8x4xi1>, vector<8x4xf32>
      %cst_12 = arith.constant dense<0.000000e+00> : vector<8xf32>
      %27 = vector.multi_reduction <add>, %26, %cst_12 [1] : vector<8x4xf32> to vector<8xf32>
      %28 = vector.shape_cast %27 : vector<8xf32> to vector<8x1xf32>
      %c8_i32 = arith.constant 8 : i32
      %29 = arith.muli %arg0, %c8_i32 : i32
      %30 = tpu.iota {dimensions = array<i32: 0>} : vector<8x1xi32>
      %31 = vector.broadcast %29 : i32 to vector<8x1xi32>
      %32 = arith.addi %31, %30 : vector<8x1xi32>
      %c8_i32_13 = arith.constant 8 : i32
      %33 = vector.broadcast %c8_i32_13 : i32 to vector<8x1xi32>
      %34 = arith.cmpi slt, %32, %33 : vector<8x1xi32>
      %35 = arith.subf %20, %28 : vector<8x1xf32>
      %cst_14 = arith.constant 0.000000e+00 : f32
      %36 = vector.broadcast %cst_14 : f32 to vector<8x1xf32>
      %37 = arith.select %34, %35, %36 : vector<8x1xi1>, vector<8x1xf32>
      %cst_15 = arith.constant dense<0.000000e+00> : vector<1xf32>
      %38 = vector.multi_reduction <add>, %37, %cst_15 [0] : vector<8x1xf32> to vector<1xf32>
      %39 = vector.shape_cast %38 : vector<1xf32> to vector<1x1xf32>
      %40 = tpu.iota {dimensions = array<i32: 0>} : vector<8x128xi32>
      %41 = tpu.iota {dimensions = array<i32: 1>} : vector<8x128xi32>
      %c0_i32_16 = arith.constant 0 : i32
      %42 = vector.broadcast %c0_i32_16 : i32 to vector<8x128xi32>
      %43 = arith.cmpi eq, %40, %42 : vector<8x128xi32>
      %c0_i32_17 = arith.constant 0 : i32
      %44 = vector.broadcast %c0_i32_17 : i32 to vector<8x128xi32>
      %45 = arith.cmpi eq, %41, %44 : vector<8x128xi32>
      %46 = arith.andi %43, %45 : vector<8x128xi1>
      %cst_18 = arith.constant 0.000000e+00 : f32
      %47 = vector.shape_cast %39 : vector<1x1xf32> to vector<1x1xf32>
      %48 = vector.broadcast %47 : vector<1x1xf32> to vector<8x128xf32>
      %49 = vector.broadcast %cst_18 : f32 to vector<8x128xf32>
      %50 = arith.select %46, %48, %49 : vector<8x128xi1>, vector<8x128xf32>
      %c1_i32 = arith.constant 1 : i32
      %51 = vector.broadcast %c1_i32 : i32 to vector<8x128xi32>
      %52 = arith.cmpi eq, %41, %51 : vector<8x128xi32>
      %53 = arith.andi %43, %52 : vector<8x128xi1>
      %c0_19 = arith.constant 0 : index
      %c0_20 = arith.constant 0 : index
      %54 = vector.load %arg11[%c0_19, %c0_20] : memref<1x1xf32, #tpu.memory_space<vmem>>, vector<1x1xf32>
      %cst_21 = arith.constant 0.000000e+00 : f32
      %55 = vector.shape_cast %54 : vector<1x1xf32> to vector<1x1xf32>
      %56 = vector.broadcast %55 : vector<1x1xf32> to vector<8x128xf32>
      %57 = vector.broadcast %cst_21 : f32 to vector<8x128xf32>
      %58 = arith.select %53, %56, %57 : vector<8x128xi1>, vector<8x128xf32>
      %59 = arith.addf %50, %58 : vector<8x128xf32>
      %c0_22 = arith.constant 0 : index
      %c0_23 = arith.constant 0 : index
      %60 = vector.load %arg10[%c0_22, %c0_23] : memref<8x128xf32, #tpu.memory_space<vmem>>, vector<8x128xf32>
      tpu.vector_store %arg10[%c0_22, %c0_23], %59 {strides = array<i32>} : memref<8x128xf32, #tpu.memory_space<vmem>>, vector<8x128xf32>,
    } else {
    }
    return
  }
  func.func @transform_0(%arg0: i32, %arg1: i32) -> (i32, i32) {
    %c0_i32 = arith.constant 0 : i32
    %c0_i32_0 = arith.constant 0 : i32
    return %arg0, %c0_i32 : i32, i32
  }
  func.func @transform_1(%arg0: i32, %arg1: i32) -> (i32, i32) {
    %0 = arith.maxsi %arg1, %arg0 : i32
    %c0_i32 = arith.constant 0 : i32
    %c0_i32_0 = arith.constant 0 : i32
    return %0, %c0_i32 : i32, i32
  }
  func.func @transform_2(%arg0: i32, %arg1: i32) -> (i32, i32) {
    %c0_i32 = arith.constant 0 : i32
    %c0_i32_0 = arith.constant 0 : i32
    %c0_i32_1 = arith.constant 0 : i32
    return %c0_i32, %c0_i32_0 : i32, i32
  }
  func.func @transform_3(%arg0: i32, %arg1: i32) -> (i32, i32) {
    %c0_i32 = arith.constant 0 : i32
    %c0_i32_0 = arith.constant 0 : i32
    return %arg0, %c0_i32 : i32, i32
  }
  func.func @transform_4(%arg0: i32, %arg1: i32) -> (i32, i32) {
    %c0_i32 = arith.constant 0 : i32
    %c0_i32_0 = arith.constant 0 : i32
    return %arg0, %c0_i32 : i32, i32
  }
  func.func @transform_5(%arg0: i32, %arg1: i32) -> (i32, i32, i32) {
    %0 = arith.maxsi %arg1, %arg0 : i32
    %c0_i32 = arith.constant 0 : i32
    %c0_i32_0 = arith.constant 0 : i32
    %c0_i32_1 = arith.constant 0 : i32
    return %0, %c0_i32, %c0_i32_0 : i32, i32, i32
  }
  func.func @transform_6(%arg0: i32, %arg1: i32) -> (i32, i32) {
    %c0_i32 = arith.constant 0 : i32
    %c0_i32_0 = arith.constant 0 : i32
    return %arg0, %c0_i32 : i32, i32
  }
  func.func @transform_7(%arg0: i32, %arg1: i32) -> (i32, i32, i32) {
    %0 = arith.maxsi %arg1, %arg0 : i32
    %c0_i32 = arith.constant 0 : i32
    %c0_i32_0 = arith.constant 0 : i32
    %c0_i32_1 = arith.constant 0 : i32
    return %0, %c0_i32, %c0_i32_0 : i32, i32, i32
  }
  func.func @transform_8(%arg0: i32, %arg1: i32) -> (i32, i32) {
    %c0_i32 = arith.constant 0 : i32
    %c0_i32_0 = arith.constant 0 : i32
    return %arg0, %c0_i32 : i32, i32
  }
}

</mosaic_0001>

<llo_original>
// kernel: tpu_custom_call.1
$region0: #{tpu_custom_call.1}
  #allocation0 [shape = 'u32[]', space=smem, size = 0x4, offset = 0x4, fixed_abs, tag = 'smem constant byte address 0x4 - core index']
  #allocation1 [shape = 'u32[144,128]{1,0:T(1,128)}', space=vmem, size = 0x12000, scoped, tag = 'internal scratch']
  #allocation2 [shape = 'f32[1,1]{1,0:T(1,128)}', space=vmem, size = 0x200, scoped, tag = 'scratch operand']
  %s0 = inlined_call_operand.vmem [shape: f32[8,128], index: 0, kind: input, shape index: {}]
  %s1 = inlined_call_operand.vmem [shape: f32[8,128], index: 1, kind: input, shape index: {}]
  %s2 = inlined_call_operand.vmem [shape: f32[4,128], index: 2, kind: input, shape index: {}]
  %s3 = inlined_call_operand.vmem [shape: s32[8,1], index: 3, kind: input, shape index: {}]
  %s4 = inlined_call_operand.vmem [shape: s32[8,1], index: 4, kind: input, shape index: {}]
  %s5 = inlined_call_operand.vmem [shape: s32[1,1,8], index: 5, kind: input, shape index: {}]
  %s6 = inlined_call_operand.vmem [shape: f32[8,1], index: 6, kind: input, shape index: {}]
  %s7 = inlined_call_operand.vmem [shape: f32[1,1,8], index: 7, kind: input, shape index: {}]
  %s8 = inlined_call_operand.hbm [shape: f32[8,128], index: 8, kind: output, shape index: {}]
  %s9 = sld [smem:[#allocation0]]
  $region62: #{tpu_custom_call.1} parent=0
    _
  %s11 = ssub.s32 1, %s9
  %s12 = scalar_select 0, %s11, %s9
  $region1: #{tpu_custom_call.1} parent=0
    #allocation3 [shape = 'u8[4096]{0}', space=vmem, size = 0x1000, scoped, tag = 'output window, operand 0, single buffered']
    #allocation4 [shape = 's32[1]{0}', space=sflag, size = 0x4, scoped, tag = 'scoped memory for tpu_custom_call.1']
    %13 = vsyncpa [#allocation4], 0
    // Predicated region
    $region2: #{tpu_custom_call.1} parent=1 // pred_check
      _
    $region3: #{tpu_custom_call.1} parent=1 // pred_check_branch
      %15 = sbr.rel (0) target = $region5
    $region4: #{tpu_custom_call.1} parent=1 // pred_region
      _
    $region5: #{tpu_custom_call.1} parent=1 // pred_fallthru
      _
    // Predicated region
    $region6: #{tpu_custom_call.1} parent=1 // pred_check
      _
    $region7: #{tpu_custom_call.1} parent=1 // pred_check_branch
      %17 = sbr.rel (0) target = $region9
    $region8: #{tpu_custom_call.1} parent=1 // pred_region
      _
    $region9: #{tpu_custom_call.1} parent=1 // pred_fallthru
      _
    // Predicated region
    $region10: #{tpu_custom_call.1} parent=1 // pred_check
      _
    $region11: #{tpu_custom_call.1} parent=1 // pred_check_branch
      %19 = sbr.rel (0) target = $region13
    $region12: #{tpu_custom_call.1} parent=1 // pred_region
      _
    $region13: #{tpu_custom_call.1} parent=1 // pred_fallthru
      _
    // Predicated region
    $region14: #{tpu_custom_call.1} parent=1 // pred_check
      _
    $region15: #{tpu_custom_call.1} parent=1 // pred_check_branch
      %21 = sbr.rel (0) target = $region17
    $region16: #{tpu_custom_call.1} parent=1 // pred_region
      _
    $region17: #{tpu_custom_call.1} parent=1 // pred_fallthru
      _
    // Predicated region
    $region18: #{tpu_custom_call.1} parent=1 // pred_check
      _
    $region19: #{tpu_custom_call.1} parent=1 // pred_check_branch
      %23 = sbr.rel (0) target = $region21
    $region20: #{tpu_custom_call.1} parent=1 // pred_region
      _
    $region21: #{tpu_custom_call.1} parent=1 // pred_fallthru
      _
    // Predicated region
    $region22: #{tpu_custom_call.1} parent=1 // pred_check
      _
    $region23: #{tpu_custom_call.1} parent=1 // pred_check_branch
      %25 = sbr.rel (0) target = $region25
    $region24: #{tpu_custom_call.1} parent=1 // pred_region
      _
    $region25: #{tpu_custom_call.1} parent=1 // pred_fallthru
      _
    // Predicated region
    $region26: #{tpu_custom_call.1} parent=1 // pred_check
      _
    $region27: #{tpu_custom_call.1} parent=1 // pred_check_branch
      %27 = sbr.rel (0) target = $region29
    $region28: #{tpu_custom_call.1} parent=1 // pred_region
      _
    $region29: #{tpu_custom_call.1} parent=1 // pred_fallthru
      _
    // Predicated region
    $region30: #{tpu_custom_call.1} parent=1 // pred_check
      _
    $region31: #{tpu_custom_call.1} parent=1 // pred_check_branch
      %29 = sbr.rel (0) target = $region33
    $region32: #{tpu_custom_call.1} parent=1 // pred_region
      _
    $region33: #{tpu_custom_call.1} parent=1 // pred_fallthru
      _
    %p30 = scmp.eq.s32.totalorder 0, 0
    // Predicated region
    $region34: #{tpu_custom_call.1} parent=1 // pred_check
      %p31 = pneg %p30
    $region35: #{tpu_custom_call.1} parent=1 // pred_check_branch
      %33 = sbr.rel (%p31) target = $region37
    $region36: #{tpu_custom_call.1} parent=1 // pred_region
      %vm34 = vcmask 0
      %35 = vst.msk [vmem:[#allocation2] sm:$0x1] %vm34, 0.0
    $region37: #{tpu_custom_call.1} parent=1 // pred_fallthru
      _
    %p36 = scmp.ge.s32.totalorder 0, 0
    // Predicated region
    $region38: #{tpu_custom_call.1} parent=1 // pred_check
      %p37 = pneg %p36
    $region39: #{tpu_custom_call.1} parent=1 // pred_check_branch
      %39 = sbr.rel (%p37) target = $region41
    $region40: #{tpu_custom_call.1} parent=1 // pred_region
      %v40 = vld [vmem:[%s0] sm:$0xff]
      %v41 = vld [vmem:[%s1] sm:$0xff]
      %42 = vmatprep.subr.mxu0 0.0
      %43 = vmatpush1.xpose.msra.mxu0 %v41
      %44 = vmatprep.subr.mxu0 0.0
      %45 = vmatpush1.xpose.msra.mxu0 0.0
      %46 = vmatprep.subr.mxu0 0.0
      %47 = vmatpush1.xpose.msra.mxu0 0.0
      %48 = vmatprep.subr.mxu0 0.0
      %49 = vmatpush1.xpose.msra.mxu0 0.0
      %50 = vmatprep.subr.mxu0 0.0
      %51 = vmatpush1.xpose.msra.mxu0 0.0
      %52 = vmatprep.subr.mxu0 0.0
      %53 = vmatpush1.xpose.msra.mxu0 0.0
      %54 = vmatprep.subr.mxu0 0.0
      %55 = vmatpush1.xpose.msra.mxu0 0.0
      %56 = vmatprep.subr.mxu0 0.0
      %57 = vmatpush1.xpose.msra.mxu0 0.0
      %58 = vmatprep.subr.mxu0 0.0
      %59 = vmatpush1.xpose.msra.mxu0 0.0
      %60 = vmatprep.subr.mxu0 0.0
      %61 = vmatpush1.xpose.msra.mxu0 0.0
      %62 = vmatprep.subr.mxu0 0.0
      %63 = vmatpush1.xpose.msra.mxu0 0.0
      %64 = vmatprep.subr.mxu0 0.0
      %65 = vmatpush1.xpose.msra.mxu0 0.0
      %66 = vmatprep.subr.mxu0 0.0
      %67 = vmatpush1.xpose.msra.mxu0 0.0
      %68 = vmatprep.subr.mxu0 0.0
      %69 = vmatpush1.xpose.msra.mxu0 0.0
      %70 = vmatprep.subr.mxu0 0.0
      %71 = vmatpush1.xpose.msra.mxu0 0.0
      %72 = vmatprep.subr.mxu0 0.0
      %73 = vmatpush1.xpose.msra.mxu0 0.0
      %74 = vmatprep.subr.mxu0 0.0
      %75 = vmatpush1.xpose.msra.mxu0 0.0
      %76 = vmatprep.subr.mxu0 0.0
      %77 = vmatpush1.xpose.msra.mxu0 0.0
      %78 = vmatprep.subr.mxu0 0.0
      %79 = vmatpush1.xpose.msra.mxu0 0.0
      %80 = vmatprep.subr.mxu0 0.0
      %81 = vmatpush1.xpose.msra.mxu0 0.0
      %82 = vmatprep.subr.mxu0 0.0
      %83 = vmatpush1.xpose.msra.mxu0 0.0
      %84 = vmatprep.subr.mxu0 0.0
      %85 = vmatpush1.xpose.msra.mxu0 0.0
      %86 = vmatprep.subr.mxu0 0.0
      %87 = vmatpush1.xpose.msra.mxu0 0.0
      %88 = vmatprep.subr.mxu0 0.0
      %89 = vmatpush1.xpose.msra.mxu0 0.0
      %90 = vmatprep.subr.mxu0 0.0
      %91 = vmatpush1.xpose.msra.mxu0 0.0
      %92 = vmatprep.subr.mxu0 0.0
      %93 = vmatpush1.xpose.msra.mxu0 0.0
      %94 = vmatprep.subr.mxu0 0.0
      %95 = vmatpush1.xpose.msra.mxu0 0.0
      %96 = vmatprep.subr.mxu0 0.0
      %97 = vmatpush1.xpose.msra.mxu0 0.0
      %98 = vmatprep.subr.mxu0 0.0
      %99 = vmatpush1.xpose.msra.mxu0 0.0
      %100 = vmatprep.subr.mxu0 0.0
      %101 = vmatpush1.xpose.msra.mxu0 0.0
      %102 = vmatprep.subr.mxu0 0.0
      %103 = vmatpush1.xpose.msra.mxu0 0.0
      %104 = vmatprep.subr.mxu0 0.0
      %105 = vmatpush1.xpose.msra.mxu0 0.0
      %106 = vmatprep.mubr.f32.mxu0 0.0
      %107 = vmatmul.mubr.f32.gmra.mrb[0].mxu0 %v40
      %v108 = vpop.f32.mrb[0].mxu0
      %v109 = vadd.f32 0.0, %v108
      %v110 = vpop.f32.mrb[0].mxu0
      %111 = vdwg.mxu0
      %v112 = vld [vmem:[%s6] sm:$0xff]
      %v113 = vld [vmem:[%s7] sm:$0x1]
      %115 = vset.pattern.permute.xlu0 0
      %116 = vperm.xlu0 %115, %v112
      %v117 = vpop.permute.xlu0 %116
      %v120 = vlaneseq
      %v121 = vshrl.u32 %v120, 7
      %v122 = vsub.s32 0, %v121
      %v123 = vrot.slane %v113, %v122
      %v125 = vadd.f32 %v117, %v123
      %v126 = vmul.f32 %v109, 2.0
      %v127 = vsub.f32 %v125, %v126
      %v128 = vmax.f32 %v127, 0.0
      %v129 = vadd.f32 %v128, 1e-12
      %v130 = vrsqrt.pop %v129
      %v131 = vmul.f32 %v129, %v130
      %vm132 = vcmp.eq.f32.partialorder %v129, inf
      %v133 = vsel %vm132, %v129, %v131
      %vm134 = vcmp.eq.f32.partialorder %v129, 0.0
      %v135 = vand.u32 %v129, 2147483648
      %v136 = vsel %vm134, %v135, %v133
      %v137 = vld [vmem:[%s4] sm:$0xff]
      %v138 = vld [vmem:[%s5] sm:$0x1]
      %139 = vset.pattern.permute.xlu0 0
      %140 = vperm.xlu0 %139, %v137
      %v141 = vpop.permute.xlu0 %140
      %v142 = vlaneseq
      %v143 = vshrl.u32 %v142, 7
      %v144 = vsub.s32 0, %v143
      %v145 = vrot.slane %v138, %v144
      %vm146 = vcmp.eq.s32.totalorder %v141, %v145
      %v147 = vsub.f32 0.5, %v136
      %v148 = vmax.f32 %v147, 0.0
      %v149 = vmul.f32 %v148, %v148
      %v150 = vsel %vm146, %v128, %v149
      %p151 = scmp.gt.s32.totalorder 0, 0
      %s152 = sadd.s32 0, 1
      %s153 = smul.u32 %s152, 8
      %p154 = scmp.le.s32.totalorder %s153, 8
      %p155 = pnand %p151, %p154
      %p156 = pneg %p155
      // Predicated region
      $region42: #{tpu_custom_call.1} parent=40 // pred_check
        _
      $region43: #{tpu_custom_call.1} parent=40 // pred_check_branch
        %158 = sbr.rel (%p155) target = $region45
      $region44: #{tpu_custom_call.1} parent=40 // pred_region
        %v159 = vld [vmem:[#allocation2] sm:$0x1]
        %vm160 = vcmask 64512
        %v161 = vsel %vm160, %v150, 0.0
        %162 = vadd.xlane.f32.xlu0 %v161
        %v163 = vpop.xlane.xlu0 %162
        %v164 = vrot.slane %v163, 4
        %v165 = vadd.f32 %v163, %v164
        %v166 = vrot.slane %v165, 2
        %v167 = vadd.f32 %v165, %v166
        %v168 = vrot.slane %v167, 1
        %v169 = vadd.f32 %v167, %v168
        %v170 = vadd.f32 %v159, %v169
        %vm171 = vcmask 0
        %172 = vst.msk [vmem:[#allocation2] sm:$0x1] %vm171, %v170
      $region45: #{tpu_custom_call.1} parent=40 // pred_fallthru
        _
      %p173 = pneg %p156
      // Predicated region
      $region46: #{tpu_custom_call.1} parent=40 // pred_check
        _
      $region47: #{tpu_custom_call.1} parent=40 // pred_check_branch
        %175 = sbr.rel (%p156) target = $region49
      $region48: #{tpu_custom_call.1} parent=40 // pred_region
        %s176 = smul.u32 0, 8
        %v177 = vlaneseq
        %v178 = vshrl.u32 %v177, 7
        %v179 = vstv %s176
        %v180 = vadd.s32 %v179, %v178
        %s181 = smul.u32 0, 8
        %v182 = vlaneseq
        %v183 = vand.u32 %v182, 127
        %v184 = vstv %s181
        %v185 = vadd.s32 %v184, %v183
        %vm186 = vcmp.lt.s32.totalorder %v180, %v185
        %vm187 = vcmp.lt.s32.totalorder %v185, 8
        %vm188 = vmand %vm186, %vm187
        %v189 = vld [vmem:[#allocation2] sm:$0x1]
        %v190 = vsel %vm188, %v150, 0.0
        %vm191 = vcmask 64512
        %v192 = vsel %vm191, %v190, 0.0
        %193 = vadd.xlane.f32.xlu0 %v192
        %v194 = vpop.xlane.xlu0 %193
        %v195 = vrot.slane %v194, 4
        %v196 = vadd.f32 %v194, %v195
        %v197 = vrot.slane %v196, 2
        %v198 = vadd.f32 %v196, %v197
        %v199 = vrot.slane %v198, 1
        %v200 = vadd.f32 %v198, %v199
        %v201 = vadd.f32 %v189, %v200
        %vm202 = vcmask 0
        %203 = vst.msk [vmem:[#allocation2] sm:$0x1] %vm202, %v201
      $region49: #{tpu_custom_call.1} parent=40 // pred_fallthru
        _
    $region41: #{tpu_custom_call.1} parent=1 // pred_fallthru
      _
    // Predicated region
    $region50: #{tpu_custom_call.1} parent=1 // pred_check
      %p204 = pneg %p30
    $region51: #{tpu_custom_call.1} parent=1 // pred_check_branch
      %206 = sbr.rel (%p204) target = $region53
    $region52: #{tpu_custom_call.1} parent=1 // pred_region
      %v207 = vld [vmem:[%s0] sm:$0xff]
      %v208 = vld [vmem:[%s2] sm:$0xf]
      %209 = vmatprep.subr.mxu0 0.0
      %210 = vmatpush1.xpose.msra.mxu0 %v208
      %211 = vmatprep.subr.mxu0 0.0
      %212 = vmatpush1.xpose.msra.mxu0 0.0
      %213 = vmatprep.subr.mxu0 0.0
      %214 = vmatpush1.xpose.msra.mxu0 0.0
      %215 = vmatprep.subr.mxu0 0.0
      %216 = vmatpush1.xpose.msra.mxu0 0.0
      %217 = vmatprep.subr.mxu0 0.0
      %218 = vmatpush1.xpose.msra.mxu0 0.0
      %219 = vmatprep.subr.mxu0 0.0
      %220 = vmatpush1.xpose.msra.mxu0 0.0
      %221 = vmatprep.subr.mxu0 0.0
      %222 = vmatpush1.xpose.msra.mxu0 0.0
      %223 = vmatprep.subr.mxu0 0.0
      %224 = vmatpush1.xpose.msra.mxu0 0.0
      %225 = vmatprep.subr.mxu0 0.0
      %226 = vmatpush1.xpose.msra.mxu0 0.0
      %227 = vmatprep.subr.mxu0 0.0
      %228 = vmatpush1.xpose.msra.mxu0 0.0
      %229 = vmatprep.subr.mxu0 0.0
      %230 = vmatpush1.xpose.msra.mxu0 0.0
      %231 = vmatprep.subr.mxu0 0.0
      %232 = vmatpush1.xpose.msra.mxu0 0.0
      %233 = vmatprep.subr.mxu0 0.0
      %234 = vmatpush1.xpose.msra.mxu0 0.0
      %235 = vmatprep.subr.mxu0 0.0
      %236 = vmatpush1.xpose.msra.mxu0 0.0
      %237 = vmatprep.subr.mxu0 0.0
      %238 = vmatpush1.xpose.msra.mxu0 0.0
      %239 = vmatprep.subr.mxu0 0.0
      %240 = vmatpush1.xpose.msra.mxu0 0.0
      %241 = vmatprep.subr.mxu0 0.0
      %242 = vmatpush1.xpose.msra.mxu0 0.0
      %243 = vmatprep.subr.mxu0 0.0
      %244 = vmatpush1.xpose.msra.mxu0 0.0
      %245 = vmatprep.subr.mxu0 0.0
      %246 = vmatpush1.xpose.msra.mxu0 0.0
      %247 = vmatprep.subr.mxu0 0.0
      %248 = vmatpush1.xpose.msra.mxu0 0.0
      %249 = vmatprep.subr.mxu0 0.0
      %250 = vmatpush1.xpose.msra.mxu0 0.0
      %251 = vmatprep.subr.mxu0 0.0
      %252 = vmatpush1.xpose.msra.mxu0 0.0
      %253 = vmatprep.subr.mxu0 0.0
      %254 = vmatpush1.xpose.msra.mxu0 0.0
      %255 = vmatprep.subr.mxu0 0.0
      %256 = vmatpush1.xpose.msra.mxu0 0.0
      %257 = vmatprep.subr.mxu0 0.0
      %258 = vmatpush1.xpose.msra.mxu0 0.0
      %259 = vmatprep.subr.mxu0 0.0
      %260 = vmatpush1.xpose.msra.mxu0 0.0
      %261 = vmatprep.subr.mxu0 0.0
      %262 = vmatpush1.xpose.msra.mxu0 0.0
      %263 = vmatprep.subr.mxu0 0.0
      %264 = vmatpush1.xpose.msra.mxu0 0.0
      %265 = vmatprep.subr.mxu0 0.0
      %266 = vmatpush1.xpose.msra.mxu0 0.0
      %267 = vmatprep.subr.mxu0 0.0
      %268 = vmatpush1.xpose.msra.mxu0 0.0
      %269 = vmatprep.subr.mxu0 0.0
      %270 = vmatpush1.xpose.msra.mxu0 0.0
      %271 = vmatprep.subr.mxu0 0.0
      %272 = vmatpush1.xpose.msra.mxu0 0.0
      %273 = vmatprep.mubr.f32.mxu0 0.0
      %274 = vmatmul.mubr.f32.gmra.mrb[0].mxu0 %v207
      %v275 = vpop.f32.mrb[0].mxu0
      %v276 = vadd.f32 0.0, %v275
      %v277 = vpop.f32.mrb[0].mxu0
      %278 = vdwg.mxu0
      %vm279 = vcmask 31744
      %v280 = vsel %vm279, %v276, -inf
      %281 = vmax.xlane.f32.xlu0 %v280
      %v282 = vpop.xlane.xlu0 %281
      %v283 = vsub.f32 %v276, %v282
      %v284 = vmul.f32 %v283, 1.442695
      %v285 = vpow.pop %v284
      %v286 = vsel %vm279, %v285, 0.0
      %287 = vadd.xlane.f32.xlu0 %v286
      %v288 = vpop.xlane.xlu0 %287
      %v289 = vlog2.pop %v288
      %v290 = vmul.f32 %v289, 0.6931472
      %v291 = vadd.f32 %v282, %v290
      %v292 = vlaneseq
      %v293 = vand.u32 %v292, 127
      %v294 = vld [vmem:[%s3] sm:$0xff]
      %295 = vset.pattern.permute.xlu0 0
      %296 = vperm.xlu0 %295, %v294
      %v297 = vpop.permute.xlu0 %296
      %vm298 = vcmp.eq.s32.totalorder %v293, %v297
      %v299 = vsel %vm298, %v276, 0.0
      %v300 = vsel %vm279, %v299, 0.0
      %301 = vadd.xlane.f32.xlu0 %v300
      %v302 = vpop.xlane.xlu0 %301
      %s303 = smul.u32 0, 8
      %v304 = vlaneseq
      %v305 = vshrl.u32 %v304, 7
      %v306 = vstv %s303
      %v307 = vadd.s32 %v306, %v305
      %vm308 = vcmp.lt.s32.totalorder %v307, 8
      %v309 = vsub.f32 %v291, %v302
      %v310 = vsel %vm308, %v309, 0.0
      %v311 = vrot.slane %v310, 4
      %v312 = vadd.f32 %v310, %v311
      %v313 = vrot.slane %v312, 2
      %v314 = vadd.f32 %v312, %v313
      %v315 = vrot.slane %v314, 1
      %v316 = vadd.f32 %v314, %v315
      %vm317 = vcmp.eq.s32.totalorder %v305, 0
      %vm318 = vcmp.eq.s32.totalorder %v293, 0
      %vm319 = vmand %vm317, %vm318
      %v320 = vsel %vm319, %v316, 0.0
      %vm321 = vcmp.eq.s32.totalorder %v293, 1
      %vm322 = vmand %vm317, %vm321
      %v323 = vld [vmem:[#allocation2] sm:$0x1]
      %v325 = vlaneseq
      %v326 = vshrl.u32 %v325, 7
      %v327 = vsub.s32 0, %v326
      %v328 = vrot.slane %v323, %v327
      %329 = vset.pattern.permute.xlu0 0
      %330 = vperm.xlu0 %329, %v328
      %v331 = vpop.permute.xlu0 %330
      %v333 = vsel %vm322, %v331, 0.0
      %v334 = vadd.f32 %v320, %v333
      %335 = vst [vmem:[#allocation3] sm:$0xff] %v334
    $region53: #{tpu_custom_call.1} parent=1 // pred_fallthru
      _
    // Predicated region
    $region54: #{tpu_custom_call.1} parent=1 // pred_check
      _
    $region55: #{tpu_custom_call.1} parent=1 // pred_check_branch
      %337 = sbr.rel (0) target = $region57
    $region56: #{tpu_custom_call.1} parent=1 // pred_region
      %s339 = ssub.s32 128, 128
      %340 = vsyncadd [#allocation4], %s339
      %s342 = sshll.u32 [#allocation3], 4
      %s343 = int_to_ptr.vmem [resolvable:$true] %s342
      %345 = dma.vmem_to_hbm [thread:$0]  %s343, 128, %s8, [#allocation4]
    $region57: #{tpu_custom_call.1} parent=1 // pred_fallthru
      _
    // Predicated region
    $region58: #{tpu_custom_call.1} parent=1 // pred_check
      _
    $region59: #{tpu_custom_call.1} parent=1 // pred_check_branch
      %347 = sbr.rel (0) target = $region61
    $region60: #{tpu_custom_call.1} parent=1 // pred_region
      %348 = dma.done [#allocation4], 128
    $region61: #{tpu_custom_call.1} parent=1 // pred_fallthru
      _
    %349 = vsyncpa [#allocation4], 1

</llo_original>
